<compile_context>
chip_gen: v7x
topology: tpu7x:2x2x1
jax: 0.10.0
libtpu: 0.0.40
codegen_flags: <defaults>
</compile_context>

<pallas_src>
import functools

import jax
import jax.numpy as jnp
import numpy as np
from jax import lax
from jax.experimental import pallas as pl
from jax.experimental.pallas import tpu as pltpu


def _tile_ce_sums(logits_in, labels_row, valid=None):
    """CE sum & correct-count for a (C, T) logits tile with (1, T) int labels.

    `valid` (optional (1, T) bool) masks out ragged-tail columns.  Math runs
    in f32 regardless of the input dtype.  Returns two (1, 1) f32 arrays.
    """
    logits = logits_in.astype(jnp.float32)
    c = logits.shape[0]
    cls_iota = lax.broadcasted_iota(jnp.int32, logits.shape, 0)      # (C, T)
    col_max = jnp.max(logits, axis=0, keepdims=True)                 # (1, T)
    shifted = logits - col_max                                       # (C, T)
    lse = jnp.log(jnp.sum(jnp.exp(shifted), axis=0, keepdims=True))  # (1, T)
    onehot = cls_iota == labels_row                                  # (C, T)
    picked = jnp.sum(jnp.where(onehot, shifted, 0.0), axis=0, keepdims=True)
    ce_col = lse - picked                                            # (1, T)
    # argmax = first maximal class index (torch tie-breaking semantics)
    pred_idx = jnp.min(jnp.where(logits == col_max, cls_iota, c),
                       axis=0, keepdims=True)                        # (1, T)
    hit = pred_idx == labels_row                                     # (1, T)
    if valid is not None:
        ce_col = jnp.where(valid, ce_col, 0.0)
        hit = valid & hit
    ce_sum = jnp.sum(ce_col, axis=1, keepdims=True)                  # (1, 1)
    correct = jnp.sum(jnp.where(hit, 1.0, 0.0), axis=1, keepdims=True)
    return ce_sum, correct


def _attention_ce_kernel(inv_n, inv_b, hw, tn, needs_mask,
                         wcoef_ref, pred_ref, label_ref, wts_ref, rlabel_ref,
                         out_ref, ce_acc_ref, ok_acc_ref):
    b = pl.program_id(0)
    i = pl.program_id(1)

    @pl.when((b == 0) & (i == 0))
    def _init():
        ce_acc_ref[...] = jnp.zeros_like(ce_acc_ref)
        ok_acc_ref[...] = jnp.zeros_like(ok_acc_ref)

    # --- hot path: classification CE over the current (C, TN) tile ---
    labels_row = label_ref[...]                                  # (1, TN)
    valid = None
    if needs_mask:
        lane = lax.broadcasted_iota(jnp.int32, labels_row.shape, 1)
        valid = (i * tn + lane) < hw                             # ragged tail
    ce_sum, correct = _tile_ce_sums(pred_ref[...], labels_row, valid)
    ce_acc_ref[...] += ce_sum
    ok_acc_ref[...] += correct

    @pl.when((b == pl.num_programs(0) - 1) & (i == pl.num_programs(1) - 1))
    def _finalize():
        # tiny rotation CE, computed exactly once on the resident (A, B) block
        r_sum, r_ok = _tile_ce_sums(wts_ref[...], rlabel_ref[...])
        cls_loss = ce_acc_ref[...] * inv_n                       # (1, 1)
        acc = ok_acc_ref[...] * inv_n
        r_loss = r_sum * inv_b
        racc = r_ok * inv_b
        w_cls = wcoef_ref[0]                                     # SMEM scalars
        w_r = wcoef_ref[1]
        loss = w_cls * cls_loss + w_r * r_loss
        # pack the five scalars into one lane-dense (1, 128) row: single store.
        lane = lax.broadcasted_iota(jnp.int32, out_ref.shape, 1)
        out_ref[...] = (jnp.where(lane == 0, loss, 0.0)
                        + jnp.where(lane == 1, cls_loss, 0.0)
                        + jnp.where(lane == 2, r_loss, 0.0)
                        + jnp.where(lane == 3, acc, 0.0)
                        + jnp.where(lane == 4, racc, 0.0))


def attention_cross_entropy_loss(pred, label, wts, rlabel, *,
                                 loss_type="default", loss_margin=1.0,
                                 iter_counter=0, pretrain_step=2000,
                                 tile_n=16384):
    """Mirrors AttentionCrossEntropyLoss.forward.

    Returns (loss, cls_loss, r_loss, acc, racc) as float32 scalars.
    """
    # --- loss_type / schedule handling (pure python, like the module) ---
    m = float(loss_margin)
    if loss_type == "schedule":
        w = min(float(iter_counter) / float(pretrain_step), 1.0)
        w_cls, w_r = w, m + 1.0 - w
    elif loss_type == "default":
        w_cls, w_r = 1.0, m
    elif loss_type == "no_reg":
        w_cls, w_r = 1.0, 0.0
    else:
        raise NotImplementedError(f"{loss_type} is not Implemented!")
    # runtime scalars via SMEM input: schedule changes do NOT recompile
    wcoef = jnp.array([w_cls, w_r], dtype=jnp.float32)

    # --- native (B, C, HW) layout: no transpose, no pad, no upcast ---
    pred = jnp.asarray(pred)
    if not jnp.issubdtype(pred.dtype, jnp.floating):
        pred = pred.astype(jnp.float32)
    if pred.ndim >= 3:
        pred3 = pred.reshape(pred.shape[0], pred.shape[1], -1)   # free reshape
    else:
        # (N, C) fallback: tiny transpose to (1, C, N)
        pred3 = pred.T[None]
    bsz, c, hw = pred3.shape
    label3 = jnp.asarray(label, jnp.int32).reshape(bsz, 1, hw)

    wts_t = jnp.asarray(wts)
    if not jnp.issubdtype(wts_t.dtype, jnp.floating):
        wts_t = wts_t.astype(jnp.float32)
    wts_t = wts_t.T                                              # (A, B) tiny
    rlabel_row = jnp.asarray(rlabel, jnp.int32).reshape(1, -1)
    a, b_rot = wts_t.shape
    assert rlabel_row.shape[1] == b_rot

    # tile the lane-dense sample axis; ragged tail is masked in-kernel
    assert tile_n % 128 == 0
    tn = hw if hw <= tile_n else tile_n
    num_tiles = pl.cdiv(hw, tn)
    needs_mask = (hw % tn) != 0

    n_total = bsz * hw
    kernel = functools.partial(_attention_ce_kernel,
                               1.0 / float(n_total), 1.0 / float(b_rot),
                               hw, tn, needs_mask)

    out = pl.pallas_call(
        kernel,
        grid=(bsz, num_tiles),
        in_specs=[
            pl.BlockSpec(memory_space=pltpu.MemorySpace.SMEM),   # (2,) weights
            pl.BlockSpec((None, c, tn), lambda b, i: (b, 0, i)),  # pred tile
            pl.BlockSpec((None, 1, tn), lambda b, i: (b, 0, i)),  # label tile
            pl.BlockSpec((a, b_rot), lambda b, i: (0, 0)),        # wts resident
            pl.BlockSpec((1, b_rot), lambda b, i: (0, 0)),        # rlabel res.
        ],
        out_specs=pl.BlockSpec((1, 128), lambda b, i: (0, 0)),
        out_shape=jax.ShapeDtypeStruct((1, 128), jnp.float32),
        scratch_shapes=[pltpu.VMEM((1, 1), jnp.float32),          # CE sum acc
                        pltpu.VMEM((1, 1), jnp.float32)],         # correct acc
        compiler_params=pltpu.CompilerParams(
            dimension_semantics=("arbitrary", "arbitrary"),
            vmem_limit_bytes=32 * 1024 * 1024),
    )(wcoef, pred3, label3, wts_t, rlabel_row)

    loss, cls_loss, r_loss, acc, racc = (out[0, 0], out[0, 1], out[0, 2],
                                         out[0, 3], out[0, 4])
    return loss, cls_loss, r_loss, acc, racc


if __name__ == "__main__":
    key = jax.random.PRNGKey(0)
    k1, k2, k3, k4 = jax.random.split(key, 4)

    B = 2     # batch
    C = 16    # number of categories (class dim is torch dim 1)
    S = 8     # spatial side -> pred is (B, C, S, S), label is (B, S, S)
    A = 12    # number of rotation anchors

    pred = jax.random.normal(k1, (B, C, S, S), dtype=jnp.float32)
    label = jax.random.randint(k2, (B, S, S), 0, C, dtype=jnp.int32)
    wts = jax.random.normal(k3, (B, A), dtype=jnp.float32)
    rlabel = jax.random.randint(k4, (B,), 0, A, dtype=jnp.int32)

    outs = attention_cross_entropy_loss(
        pred, label, wts, rlabel,
        loss_type="default", loss_margin=1.0, iter_counter=0)
    outs = jax.block_until_ready(outs)
    loss, cls_loss, r_loss, acc, racc = outs

    # --- pure-JAX reference (torch CrossEntropyLoss semantics) sanity check ---
    def ce_ref(logits2d, lab1d):
        lp = jax.nn.log_softmax(logits2d, axis=-1)
        picked = jnp.take_along_axis(lp, lab1d[:, None], axis=-1)[:, 0]
        l = -jnp.mean(picked)
        a_ = jnp.mean((jnp.argmax(logits2d, axis=-1) == lab1d)
                      .astype(jnp.float32))
        return l, a_

    pred2d = jnp.transpose(pred, (0, 2, 3, 1)).reshape(-1, C)
    cls_l_ref, acc_r = ce_ref(pred2d, label.reshape(-1))
    r_l_ref, racc_r = ce_ref(wts, rlabel)
    loss_ref = cls_l_ref + 1.0 * r_l_ref

    np.testing.assert_allclose(
        np.array([loss, cls_loss, r_loss, acc, racc]),
        np.array([loss_ref, cls_l_ref, r_l_ref, acc_r, racc_r]),
        rtol=1e-5, atol=1e-5)

    print("KERNEL_OK")
</pallas_src>

<mosaic_0001>
module attributes {stable_mosaic.version = 11 : i64} {
  func.func @_attention_ce_kernel(%arg0: i32, %arg1: i32, %arg2: memref<2xf32, #tpu.memory_space<smem>>, %arg3: memref<1x16x64xf32, #tpu.memory_space<vmem>>, %arg4: memref<1x1x64xi32, #tpu.memory_space<vmem>>, %arg5: memref<12x2xf32, #tpu.memory_space<vmem>>, %arg6: memref<1x2xi32, #tpu.memory_space<vmem>>, %arg7: memref<1x128xf32, #tpu.memory_space<vmem>>, %arg8: memref<1x1xf32, #tpu.memory_space<vmem>>, %arg9: memref<1x1xf32, #tpu.memory_space<vmem>>) attributes {dimension_semantics = [#tpu.dimension_semantics<arbitrary>, #tpu.dimension_semantics<arbitrary>], iteration_bounds = array<i64: 2, 1>, scalar_prefetch = 0 : i64, scratch_operands = 2 : i64, tpu.core_type = #tpu.core_type<tc>, window_params = [{transform_indices = @transform_0, window_bounds = array<i64: 2>}, {transform_indices = @transform_1, window_bounds = array<i64: 1, 16, 64>}, {transform_indices = @transform_2, window_bounds = array<i64: 1, 1, 64>}, {pipeline_mode = #tpu.pipeline_mode<synchronous>, transform_indices = @transform_3, window_bounds = array<i64: 12, 2>}, {pipeline_mode = #tpu.pipeline_mode<synchronous>, transform_indices = @transform_4, window_bounds = array<i64: 1, 2>}, {pipeline_mode = #tpu.pipeline_mode<synchronous>, transform_indices = @transform_5, window_bounds = array<i64: 1, 128>}]} {
    %c0_i32 = arith.constant 0 : i32
    %0 = arith.cmpi eq, %arg0, %c0_i32 : i32
    %c0_i32_0 = arith.constant 0 : i32
    %1 = arith.cmpi eq, %arg1, %c0_i32_0 : i32
    %2 = arith.andi %0, %1 : i1
    %3 = arith.extui %2 : i1 to i32
    %c0_i32_1 = arith.constant 0 : i32
    %4 = arith.cmpi ne, %3, %c0_i32_1 : i32
    scf.if %4 {
      %cst_25 = arith.constant 0.000000e+00 : f32
      %50 = vector.broadcast %cst_25 : f32 to vector<1x1xf32>
      %c0_26 = arith.constant 0 : index
      %c0_27 = arith.constant 0 : index
      %51 = vector.load %arg8[%c0_26, %c0_27] : memref<1x1xf32, #tpu.memory_space<vmem>>, vector<1x1xf32>
      tpu.vector_store %arg8[%c0_26, %c0_27], %50 {strides = array<i32>} : memref<1x1xf32, #tpu.memory_space<vmem>>, vector<1x1xf32>,
      %cst_28 = arith.constant 0.000000e+00 : f32
      %52 = vector.broadcast %cst_28 : f32 to vector<1x1xf32>
      %c0_29 = arith.constant 0 : index
      %c0_30 = arith.constant 0 : index
      %53 = vector.load %arg9[%c0_29, %c0_30] : memref<1x1xf32, #tpu.memory_space<vmem>>, vector<1x1xf32>
      tpu.vector_store %arg9[%c0_29, %c0_30], %52 {strides = array<i32>} : memref<1x1xf32, #tpu.memory_space<vmem>>, vector<1x1xf32>,
    } else {
    }
    %c0 = arith.constant 0 : index
    %c0_2 = arith.constant 0 : index
    %c0_3 = arith.constant 0 : index
    %5 = vector.load %arg4[%c0, %c0_2, %c0_3] : memref<1x1x64xi32, #tpu.memory_space<vmem>>, vector<1x1x64xi32>
    %6 = vector.shape_cast %5 : vector<1x1x64xi32> to vector<1x64xi32>
    %c0_4 = arith.constant 0 : index
    %c0_5 = arith.constant 0 : index
    %c0_6 = arith.constant 0 : index
    %7 = vector.load %arg3[%c0_4, %c0_5, %c0_6] : memref<1x16x64xf32, #tpu.memory_space<vmem>>, vector<1x16x64xf32>
    %8 = vector.shape_cast %7 : vector<1x16x64xf32> to vector<16x64xf32>
    %9 = tpu.iota {dimensions = array<i32: 0>} : vector<16x64xi32>
    %cst = arith.constant dense<0xFF800000> : vector<64xf32>
    %10 = vector.multi_reduction <maximumf>, %8, %cst [0] : vector<16x64xf32> to vector<64xf32>
    %11 = vector.shape_cast %10 : vector<64xf32> to vector<1x64xf32>
    %12 = vector.broadcast %11 : vector<1x64xf32> to vector<16x64xf32>
    %13 = arith.subf %8, %12 : vector<16x64xf32>
    %14 = math.exp %13 : vector<16x64xf32>
    %cst_7 = arith.constant dense<0.000000e+00> : vector<64xf32>
    %15 = vector.multi_reduction <add>, %14, %cst_7 [0] : vector<16x64xf32> to vector<64xf32>
    %16 = vector.shape_cast %15 : vector<64xf32> to vector<1x64xf32>
    %17 = math.log %16 : vector<1x64xf32>
    %18 = vector.broadcast %6 : vector<1x64xi32> to vector<16x64xi32>
    %19 = arith.cmpi eq, %9, %18 : vector<16x64xi32>
    %cst_8 = arith.constant 0.000000e+00 : f32
    %20 = vector.broadcast %cst_8 : f32 to vector<16x64xf32>
    %21 = arith.select %19, %13, %20 : vector<16x64xi1>, vector<16x64xf32>
    %cst_9 = arith.constant dense<0.000000e+00> : vector<64xf32>
    %22 = vector.multi_reduction <add>, %21, %cst_9 [0] : vector<16x64xf32> to vector<64xf32>
    %23 = vector.shape_cast %22 : vector<64xf32> to vector<1x64xf32>
    %24 = arith.subf %17, %23 : vector<1x64xf32>
    %25 = vector.broadcast %11 : vector<1x64xf32> to vector<16x64xf32>
    %26 = arith.cmpf oeq, %8, %25 : vector<16x64xf32>
    %c16_i32 = arith.constant 16 : i32
    %27 = vector.broadcast %c16_i32 : i32 to vector<16x64xi32>
    %28 = arith.select %26, %9, %27 : vector<16x64xi1>, vector<16x64xi32>
    %cst_10 = arith.constant dense<2147483647> : vector<64xi32>
    %29 = vector.multi_reduction <minsi>, %28, %cst_10 [0] : vector<16x64xi32> to vector<64xi32>
    %30 = vector.shape_cast %29 : vector<64xi32> to vector<1x64xi32>
    %31 = arith.cmpi eq, %30, %6 : vector<1x64xi32>
    %cst_11 = arith.constant dense<0.000000e+00> : vector<1xf32>
    %32 = vector.multi_reduction <add>, %24, %cst_11 [1] : vector<1x64xf32> to vector<1xf32>
    %33 = vector.shape_cast %32 : vector<1xf32> to vector<1x1xf32>
    %cst_12 = arith.constant 1.000000e+00 : f32
    %cst_13 = arith.constant 0.000000e+00 : f32
    %34 = vector.broadcast %cst_12 : f32 to vector<1x64xf32>
    %35 = vector.broadcast %cst_13 : f32 to vector<1x64xf32>
    %36 = arith.select %31, %34, %35 : vector<1x64xi1>, vector<1x64xf32>
    %cst_14 = arith.constant dense<0.000000e+00> : vector<1xf32>
    %37 = vector.multi_reduction <add>, %36, %cst_14 [1] : vector<1x64xf32> to vector<1xf32>
    %38 = vector.shape_cast %37 : vector<1xf32> to vector<1x1xf32>
    %c0_15 = arith.constant 0 : index
    %c0_16 = arith.constant 0 : index
    %39 = vector.load %arg8[%c0_15, %c0_16] : memref<1x1xf32, #tpu.memory_space<vmem>>, vector<1x1xf32>
    %40 = arith.addf %39, %33 : vector<1x1xf32>
    %c0_17 = arith.constant 0 : index
    %c0_18 = arith.constant 0 : index
    %41 = vector.load %arg8[%c0_17, %c0_18] : memref<1x1xf32, #tpu.memory_space<vmem>>, vector<1x1xf32>
    tpu.vector_store %arg8[%c0_17, %c0_18], %40 {strides = array<i32>} : memref<1x1xf32, #tpu.memory_space<vmem>>, vector<1x1xf32>,
    %c0_19 = arith.constant 0 : index
    %c0_20 = arith.constant 0 : index
    %42 = vector.load %arg9[%c0_19, %c0_20] : memref<1x1xf32, #tpu.memory_space<vmem>>, vector<1x1xf32>
    %43 = arith.addf %42, %38 : vector<1x1xf32>
    %c0_21 = arith.constant 0 : index
    %c0_22 = arith.constant 0 : index
    %44 = vector.load %arg9[%c0_21, %c0_22] : memref<1x1xf32, #tpu.memory_space<vmem>>, vector<1x1xf32>
    tpu.vector_store %arg9[%c0_21, %c0_22], %43 {strides = array<i32>} : memref<1x1xf32, #tpu.memory_space<vmem>>, vector<1x1xf32>,
    %c1_i32 = arith.constant 1 : i32
    %45 = arith.cmpi eq, %arg0, %c1_i32 : i32
    %c0_i32_23 = arith.constant 0 : i32
    %46 = arith.cmpi eq, %arg1, %c0_i32_23 : i32
    %47 = arith.andi %45, %46 : i1
    %48 = arith.extui %47 : i1 to i32
    %c0_i32_24 = arith.constant 0 : i32
    %49 = arith.cmpi ne, %48, %c0_i32_24 : i32
    scf.if %49 {
      %c0_25 = arith.constant 0 : index
      %c0_26 = arith.constant 0 : index
      %50 = vector.load %arg5[%c0_25, %c0_26] : memref<12x2xf32, #tpu.memory_space<vmem>>, vector<12x2xf32>
      %c0_27 = arith.constant 0 : index
      %c0_28 = arith.constant 0 : index
      %51 = vector.load %arg6[%c0_27, %c0_28] : memref<1x2xi32, #tpu.memory_space<vmem>>, vector<1x2xi32>
      %52 = tpu.iota {dimensions = array<i32: 0>} : vector<12x2xi32>
      %cst_29 = arith.constant dense<0xFF800000> : vector<2xf32>
      %53 = vector.multi_reduction <maximumf>, %50, %cst_29 [0] : vector<12x2xf32> to vector<2xf32>
      %54 = vector.shape_cast %53 : vector<2xf32> to vector<1x2xf32>
      %55 = vector.broadcast %54 : vector<1x2xf32> to vector<12x2xf32>
      %56 = arith.subf %50, %55 : vector<12x2xf32>
      %57 = math.exp %56 : vector<12x2xf32>
      %cst_30 = arith.constant dense<0.000000e+00> : vector<2xf32>
      %58 = vector.multi_reduction <add>, %57, %cst_30 [0] : vector<12x2xf32> to vector<2xf32>
      %59 = vector.shape_cast %58 : vector<2xf32> to vector<1x2xf32>
      %60 = math.log %59 : vector<1x2xf32>
      %61 = vector.broadcast %51 : vector<1x2xi32> to vector<12x2xi32>
      %62 = arith.cmpi eq, %52, %61 : vector<12x2xi32>
      %cst_31 = arith.constant 0.000000e+00 : f32
      %63 = vector.broadcast %cst_31 : f32 to vector<12x2xf32>
      %64 = arith.select %62, %56, %63 : vector<12x2xi1>, vector<12x2xf32>
      %cst_32 = arith.constant dense<0.000000e+00> : vector<2xf32>
      %65 = vector.multi_reduction <add>, %64, %cst_32 [0] : vector<12x2xf32> to vector<2xf32>
      %66 = vector.shape_cast %65 : vector<2xf32> to vector<1x2xf32>
      %67 = arith.subf %60, %66 : vector<1x2xf32>
      %68 = vector.broadcast %54 : vector<1x2xf32> to vector<12x2xf32>
      %69 = arith.cmpf oeq, %50, %68 : vector<12x2xf32>
      %c12_i32 = arith.constant 12 : i32
      %70 = vector.broadcast %c12_i32 : i32 to vector<12x2xi32>
      %71 = arith.select %69, %52, %70 : vector<12x2xi1>, vector<12x2xi32>
      %cst_33 = arith.constant dense<2147483647> : vector<2xi32>
      %72 = vector.multi_reduction <minsi>, %71, %cst_33 [0] : vector<12x2xi32> to vector<2xi32>
      %73 = vector.shape_cast %72 : vector<2xi32> to vector<1x2xi32>
      %74 = arith.cmpi eq, %73, %51 : vector<1x2xi32>
      %cst_34 = arith.constant dense<0.000000e+00> : vector<1xf32>
      %75 = vector.multi_reduction <add>, %67, %cst_34 [1] : vector<1x2xf32> to vector<1xf32>
      %76 = vector.shape_cast %75 : vector<1xf32> to vector<1x1xf32>
      %cst_35 = arith.constant 1.000000e+00 : f32
      %cst_36 = arith.constant 0.000000e+00 : f32
      %77 = vector.broadcast %cst_35 : f32 to vector<1x2xf32>
      %78 = vector.broadcast %cst_36 : f32 to vector<1x2xf32>
      %79 = arith.select %74, %77, %78 : vector<1x2xi1>, vector<1x2xf32>
      %cst_37 = arith.constant dense<0.000000e+00> : vector<1xf32>
      %80 = vector.multi_reduction <add>, %79, %cst_37 [1] : vector<1x2xf32> to vector<1xf32>
      %81 = vector.shape_cast %80 : vector<1xf32> to vector<1x1xf32>
      %c0_38 = arith.constant 0 : index
      %c0_39 = arith.constant 0 : index
      %82 = vector.load %arg8[%c0_38, %c0_39] : memref<1x1xf32, #tpu.memory_space<vmem>>, vector<1x1xf32>
      %cst_40 = arith.constant 7.812500e-03 : f32
      %83 = vector.broadcast %cst_40 : f32 to vector<1x1xf32>
      %84 = arith.mulf %82, %83 : vector<1x1xf32>
      %c0_41 = arith.constant 0 : index
      %c0_42 = arith.constant 0 : index
      %85 = vector.load %arg9[%c0_41, %c0_42] : memref<1x1xf32, #tpu.memory_space<vmem>>, vector<1x1xf32>
      %cst_43 = arith.constant 7.812500e-03 : f32
      %86 = vector.broadcast %cst_43 : f32 to vector<1x1xf32>
      %87 = arith.mulf %85, %86 : vector<1x1xf32>
      %cst_44 = arith.constant 5.000000e-01 : f32
      %88 = vector.broadcast %cst_44 : f32 to vector<1x1xf32>
      %89 = arith.mulf %76, %88 : vector<1x1xf32>
      %cst_45 = arith.constant 5.000000e-01 : f32
      %90 = vector.broadcast %cst_45 : f32 to vector<1x1xf32>
      %91 = arith.mulf %81, %90 : vector<1x1xf32>
      %c0_46 = arith.constant 0 : index
      %92 = memref.load %arg2[%c0_46] : memref<2xf32, #tpu.memory_space<smem>>
      %c1 = arith.constant 1 : index
      %93 = memref.load %arg2[%c1] : memref<2xf32, #tpu.memory_space<smem>>
      %94 = vector.broadcast %92 : f32 to vector<1x1xf32>
      %95 = arith.mulf %94, %84 : vector<1x1xf32>
      %96 = vector.broadcast %93 : f32 to vector<1x1xf32>
      %97 = arith.mulf %96, %89 : vector<1x1xf32>
      %98 = arith.addf %95, %97 : vector<1x1xf32>
      %99 = tpu.iota {dimensions = array<i32: 1>} : vector<1x128xi32>
      %c0_i32_47 = arith.constant 0 : i32
      %100 = vector.broadcast %c0_i32_47 : i32 to vector<1x128xi32>
      %101 = arith.cmpi eq, %99, %100 : vector<1x128xi32>
      %cst_48 = arith.constant 0.000000e+00 : f32
      %102 = vector.shape_cast %98 : vector<1x1xf32> to vector<1x1xf32>
      %103 = vector.broadcast %102 : vector<1x1xf32> to vector<1x128xf32>
      %104 = vector.broadcast %cst_48 : f32 to vector<1x128xf32>
      %105 = arith.select %101, %103, %104 : vector<1x128xi1>, vector<1x128xf32>
      %c1_i32_49 = arith.constant 1 : i32
      %106 = vector.broadcast %c1_i32_49 : i32 to vector<1x128xi32>
      %107 = arith.cmpi eq, %99, %106 : vector<1x128xi32>
      %cst_50 = arith.constant 0.000000e+00 : f32
      %108 = vector.shape_cast %84 : vector<1x1xf32> to vector<1x1xf32>
      %109 = vector.broadcast %108 : vector<1x1xf32> to vector<1x128xf32>
      %110 = vector.broadcast %cst_50 : f32 to vector<1x128xf32>
      %111 = arith.select %107, %109, %110 : vector<1x128xi1>, vector<1x128xf32>
      %112 = arith.addf %105, %111 : vector<1x128xf32>
      %c2_i32 = arith.constant 2 : i32
      %113 = vector.broadcast %c2_i32 : i32 to vector<1x128xi32>
      %114 = arith.cmpi eq, %99, %113 : vector<1x128xi32>
      %cst_51 = arith.constant 0.000000e+00 : f32
      %115 = vector.shape_cast %89 : vector<1x1xf32> to vector<1x1xf32>
      %116 = vector.broadcast %115 : vector<1x1xf32> to vector<1x128xf32>
      %117 = vector.broadcast %cst_51 : f32 to vector<1x128xf32>
      %118 = arith.select %114, %116, %117 : vector<1x128xi1>, vector<1x128xf32>
      %119 = arith.addf %112, %118 : vector<1x128xf32>
      %c3_i32 = arith.constant 3 : i32
      %120 = vector.broadcast %c3_i32 : i32 to vector<1x128xi32>
      %121 = arith.cmpi eq, %99, %120 : vector<1x128xi32>
      %cst_52 = arith.constant 0.000000e+00 : f32
      %122 = vector.shape_cast %87 : vector<1x1xf32> to vector<1x1xf32>
      %123 = vector.broadcast %122 : vector<1x1xf32> to vector<1x128xf32>
      %124 = vector.broadcast %cst_52 : f32 to vector<1x128xf32>
      %125 = arith.select %121, %123, %124 : vector<1x128xi1>, vector<1x128xf32>
      %126 = arith.addf %119, %125 : vector<1x128xf32>
      %c4_i32 = arith.constant 4 : i32
      %127 = vector.broadcast %c4_i32 : i32 to vector<1x128xi32>
      %128 = arith.cmpi eq, %99, %127 : vector<1x128xi32>
      %cst_53 = arith.constant 0.000000e+00 : f32
      %129 = vector.shape_cast %91 : vector<1x1xf32> to vector<1x1xf32>
      %130 = vector.broadcast %129 : vector<1x1xf32> to vector<1x128xf32>
      %131 = vector.broadcast %cst_53 : f32 to vector<1x128xf32>
      %132 = arith.select %128, %130, %131 : vector<1x128xi1>, vector<1x128xf32>
      %133 = arith.addf %126, %132 : vector<1x128xf32>
      %c0_54 = arith.constant 0 : index
      %c0_55 = arith.constant 0 : index
      %134 = vector.load %arg7[%c0_54, %c0_55] : memref<1x128xf32, #tpu.memory_space<vmem>>, vector<1x128xf32>
      tpu.vector_store %arg7[%c0_54, %c0_55], %133 {strides = array<i32>} : memref<1x128xf32, #tpu.memory_space<vmem>>, vector<1x128xf32>,
    } else {
    }
    return
  }
  func.func @transform_0(%arg0: i32, %arg1: i32) -> i32 {
    %c0_i32 = arith.constant 0 : i32
    %c0_i32_0 = arith.constant 0 : i32
    return %c0_i32 : i32
  }
  func.func @transform_1(%arg0: i32, %arg1: i32) -> (i32, i32, i32) {
    %c0_i32 = arith.constant 0 : i32
    %c0_i32_0 = arith.constant 0 : i32
    return %arg0, %c0_i32, %arg1 : i32, i32, i32
  }
  func.func @transform_2(%arg0: i32, %arg1: i32) -> (i32, i32, i32) {
    %c0_i32 = arith.constant 0 : i32
    %c0_i32_0 = arith.constant 0 : i32
    return %arg0, %c0_i32, %arg1 : i32, i32, i32
  }
  func.func @transform_3(%arg0: i32, %arg1: i32) -> (i32, i32) {
    %c0_i32 = arith.constant 0 : i32
    %c0_i32_0 = arith.constant 0 : i32
    %c0_i32_1 = arith.constant 0 : i32
    return %c0_i32, %c0_i32_0 : i32, i32
  }
  func.func @transform_4(%arg0: i32, %arg1: i32) -> (i32, i32) {
    %c0_i32 = arith.constant 0 : i32
    %c0_i32_0 = arith.constant 0 : i32
    %c0_i32_1 = arith.constant 0 : i32
    return %c0_i32, %c0_i32_0 : i32, i32
  }
  func.func @transform_5(%arg0: i32, %arg1: i32) -> (i32, i32) {
    %c0_i32 = arith.constant 0 : i32
    %c0_i32_0 = arith.constant 0 : i32
    %c0_i32_1 = arith.constant 0 : i32
    return %c0_i32, %c0_i32_0 : i32, i32
  }
}

</mosaic_0001>

<llo_original>
// kernel: tpu_custom_call.1
$region0: #{tpu_custom_call.1}
  #allocation0 [shape = 'u32[]', space=smem, size = 0x4, offset = 0x4, fixed_abs, tag = 'smem constant byte address 0x4 - core index']
  #allocation1 [shape = 'u32[144,128]{1,0:T(1,128)}', space=vmem, size = 0x12000, scoped, tag = 'internal scratch']
  #allocation2 [shape = 'f32[1,1]{1,0:T(1,128)}', space=vmem, size = 0x200, scoped, tag = 'scratch operand']
  #allocation3 [shape = 'f32[1,1]{1,0:T(1,128)}', space=vmem, size = 0x200, scoped, tag = 'scratch operand']
  %s0 = inlined_call_operand.vmem [shape: f32[2], index: 0, kind: input, shape index: {}]
  %s1 = inlined_call_operand.hbm [shape: f32[2,16,64], index: 1, kind: input, shape index: {}]
  %s2 = inlined_call_operand.vmem [shape: s32[2,1,64], index: 2, kind: input, shape index: {}]
  %s3 = inlined_call_operand.vmem [shape: f32[12,2], index: 3, kind: input, shape index: {}]
  %s4 = inlined_call_operand.vmem [shape: s32[1,2], index: 4, kind: input, shape index: {}]
  %s5 = inlined_call_operand.hbm [shape: f32[1,128], index: 5, kind: output, shape index: {}]
  %s6 = sld [smem:[#allocation0]]
  $region69: #{tpu_custom_call.1} parent=0
    _
  %s8 = ssub.s32 1, %s6
  %s9 = scalar_select 0, %s8, %s6
  $region1: #{tpu_custom_call.1} parent=0
    #allocation4 [shape = 'u8[512]{0}', space=smem, size = 0x200, scoped, tag = 'input window, operand 0, single buffered']
    #allocation5 [shape = 's32[2]{0}', space=sflag, size = 0x8, scoped, tag = 'scoped memory for tpu_custom_call.1']
    #allocation6 [shape = 's32[2]{0}', space=sflag, size = 0x8, scoped, tag = 'scoped memory for tpu_custom_call.1']
    #allocation7 [shape = 's32[2]{0}', space=sflag, size = 0x8, scoped, tag = 'scoped memory for tpu_custom_call.1']
    #allocation8 [shape = 'u8[16384]{0}', space=vmem, size = 0x4000, scoped, tag = 'input window, operand 1']
    #allocation9 [shape = 'u8[512]{0}', space=vmem, size = 0x400, scoped, tag = 'output window, operand 0, single buffered']
    %10 = vsyncpa [#allocation7], 0
    %11 = vsyncpa [#allocation5], 0
    %s12 = scalar_lea.sflag [#allocation5], 1
    %13 = vsyncpa %s12, 0
    %14 = vsyncpa [#allocation6], 0
    loop: start=0, step=1, limit=4
    $region2: #{tpu_custom_call.1} parent=1 // loop_pre_header
      _
    $region3: #{tpu_custom_call.1} parent=1 // loop_header
      %s16 = sphi 0, %s20
      %p17 = scmp.ge.s32.totalorder %s16, 4
      %s23 = sphi 0, %s35
      %s24 = sphi 0, %s31
      %s25 = sphi 0, %s23
      %s26 = sphi 0, %s24
      %s27 = sphi 0, %s25
      %s28 = sphi 0, %s26
      %s36 = sphi 0, %s36
      %s38 = sphi 0, %s36
      %s39 = sphi 0, %s38
      %s53 = sphi 0, %s39
      %s61 = sphi 0, %s63
      %s64 = sphi 0, %s61
      %s65 = sphi 0, %s64
      %s81 = sphi 0, %s65
      %s89 = sphi 0, %s91
      %s92 = sphi 0, %s89
      %s93 = sphi 0, %s92
      %s109 = sphi 0, %s93
      %s113 = sphi 0, %s113
      %s115 = sphi 0, %s113
      %s116 = sphi 0, %s115
      %s130 = sphi 0, %s116
      %s134 = sphi 0, %s134
      %s136 = sphi 0, %s134
      %s137 = sphi 0, %s136
      %s151 = sphi 0, %s137
      %s155 = sphi 0, %s155
      %s157 = sphi 0, %s155
      %s158 = sphi 0, %s157
      %s172 = sphi 0, %s158
    $region4: #{tpu_custom_call.1} parent=1 // loop_header_branch
      %19 = sbr.rel (%p17) target = $region8
    $region5: #{tpu_custom_call.1} parent=1 // loop_body
      %s21 = ssub.s32 %s16, 1
      %s22 = ssub.s32 %s16, 2
      %s29 = sadd.s32 1, %s24
      %p30 = scmp.ge.s32.totalorder %s29, 1
      %s31 = scalar_select %p30, 0, %s29
      %s32 = sadd.s32 1, %s23
      %s33 = scalar_select %p30, %s32, %s23
      %p34 = scmp.ge.s32.totalorder %s33, 2
      %s35 = scalar_select %p34, 0, %s33
      %s37 = sadd.s32 %s36, 1
      %p40 = scmp.eq.s32.totalorder %s16, 1
      %p41 = scmp.ne.s32.totalorder %s36, %s38
      %p42 = scmp.eq.s32.totalorder %s16, 0
      %p43 = por %p41, %p42
      %p44 = scmp.ne.s32.totalorder %s36, %s38
      %p45 = scmp.eq.s32.totalorder %s21, 1
      %p46 = por %p44, %p45
      %p47 = scmp.ne.s32.totalorder %s38, %s39
      %p48 = scmp.eq.s32.totalorder %s21, 0
      %p49 = por %p47, %p48
      %p50 = scmp.ne.s32.totalorder %s38, %s39
      %p51 = scmp.eq.s32.totalorder %s22, 1
      %p52 = por %p50, %p51
      %p54 = scmp.ne.s32.totalorder %s39, %s53
      %p55 = scmp.eq.s32.totalorder %s22, 0
      %p56 = por %p54, %p55
      %s57 = ssub.s32 %s23, %s35
      %s58 = ssub.s32 %s24, %s31
      %s59 = sor.u32 %s57, %s58
      %p60 = scmp.eq.s32.totalorder %s59, 0
      %s62 = sadd.s32 %s61, 1
      %s63 = scalar_select %p60, %s61, %s62
      %p66 = pneg %p60
      %p67 = scmp.eq.s32.totalorder %s16, 1
      %p68 = por %p66, %p67
      %p69 = scmp.ne.s32.totalorder %s61, %s64
      %p70 = scmp.eq.s32.totalorder %s16, 0
      %p71 = por %p69, %p70
      %p72 = scmp.ne.s32.totalorder %s61, %s64
      %p73 = scmp.eq.s32.totalorder %s21, 1
      %p74 = por %p72, %p73
      %p75 = scmp.ne.s32.totalorder %s64, %s65
      %p76 = scmp.eq.s32.totalorder %s21, 0
      %p77 = por %p75, %p76
      %p78 = scmp.ne.s32.totalorder %s64, %s65
      %p79 = scmp.eq.s32.totalorder %s22, 1
      %p80 = por %p78, %p79
      %p82 = scmp.ne.s32.totalorder %s65, %s81
      %p83 = scmp.eq.s32.totalorder %s22, 0
      %p84 = por %p82, %p83
      %s85 = ssub.s32 %s23, %s35
      %s86 = ssub.s32 %s24, %s31
      %s87 = sor.u32 %s85, %s86
      %p88 = scmp.eq.s32.totalorder %s87, 0
      %s90 = sadd.s32 %s89, 1
      %s91 = scalar_select %p88, %s89, %s90
      %p94 = pneg %p88
      %p95 = scmp.eq.s32.totalorder %s16, 1
      %p96 = por %p94, %p95
      %p97 = scmp.ne.s32.totalorder %s89, %s92
      %p98 = scmp.eq.s32.totalorder %s16, 0
      %p99 = por %p97, %p98
      %p100 = scmp.ne.s32.totalorder %s89, %s92
      %p101 = scmp.eq.s32.totalorder %s21, 1
      %p102 = por %p100, %p101
      %p103 = scmp.ne.s32.totalorder %s92, %s93
      %p104 = scmp.eq.s32.totalorder %s21, 0
      %p105 = por %p103, %p104
      %p106 = scmp.ne.s32.totalorder %s92, %s93
      %p107 = scmp.eq.s32.totalorder %s22, 1
      %p108 = por %p106, %p107
      %p110 = scmp.ne.s32.totalorder %s93, %s109
      %p111 = scmp.eq.s32.totalorder %s22, 0
      %p112 = por %p110, %p111
      %s114 = sadd.s32 %s113, 1
      %p117 = scmp.eq.s32.totalorder %s16, 1
      %p118 = scmp.ne.s32.totalorder %s113, %s115
      %p119 = scmp.eq.s32.totalorder %s16, 0
      %p120 = por %p118, %p119
      %p121 = scmp.ne.s32.totalorder %s113, %s115
      %p122 = scmp.eq.s32.totalorder %s21, 1
      %p123 = por %p121, %p122
      %p124 = scmp.ne.s32.totalorder %s115, %s116
      %p125 = scmp.eq.s32.totalorder %s21, 0
      %p126 = por %p124, %p125
      %p127 = scmp.ne.s32.totalorder %s115, %s116
      %p128 = scmp.eq.s32.totalorder %s22, 1
      %p129 = por %p127, %p128
      %p131 = scmp.ne.s32.totalorder %s116, %s130
      %p132 = scmp.eq.s32.totalorder %s22, 0
      %p133 = por %p131, %p132
      %s135 = sadd.s32 %s134, 1
      %p138 = scmp.eq.s32.totalorder %s16, 1
      %p139 = scmp.ne.s32.totalorder %s134, %s136
      %p140 = scmp.eq.s32.totalorder %s16, 0
      %p141 = por %p139, %p140
      %p142 = scmp.ne.s32.totalorder %s134, %s136
      %p143 = scmp.eq.s32.totalorder %s21, 1
      %p144 = por %p142, %p143
      %p145 = scmp.ne.s32.totalorder %s136, %s137
      %p146 = scmp.eq.s32.totalorder %s21, 0
      %p147 = por %p145, %p146
      %p148 = scmp.ne.s32.totalorder %s136, %s137
      %p149 = scmp.eq.s32.totalorder %s22, 1
      %p150 = por %p148, %p149
      %p152 = scmp.ne.s32.totalorder %s137, %s151
      %p153 = scmp.eq.s32.totalorder %s22, 0
      %p154 = por %p152, %p153
      %s156 = sadd.s32 %s155, 1
      %p159 = scmp.eq.s32.totalorder %s16, 1
      %p160 = scmp.ne.s32.totalorder %s155, %s157
      %p161 = scmp.eq.s32.totalorder %s16, 0
      %p162 = por %p160, %p161
      %p163 = scmp.ne.s32.totalorder %s155, %s157
      %p164 = scmp.eq.s32.totalorder %s21, 1
      %p165 = por %p163, %p164
      %p166 = scmp.ne.s32.totalorder %s157, %s158
      %p167 = scmp.eq.s32.totalorder %s21, 0
      %p168 = por %p166, %p167
      %p169 = scmp.ne.s32.totalorder %s157, %s158
      %p170 = scmp.eq.s32.totalorder %s22, 1
      %p171 = por %p169, %p170
      %p173 = scmp.ne.s32.totalorder %s158, %s172
      %p174 = scmp.eq.s32.totalorder %s22, 0
      %p175 = por %p173, %p174
      %p176 = scmp.le.s32.totalorder 1, %s16
      %p177 = scmp.lt.s32.totalorder %s16, 3
      %p178 = pnand %p176, %p177
      %p179 = pneg %p178
      // Predicated region
      $region9: #{tpu_custom_call.1} parent=5 // pred_check
        _
      $region10: #{tpu_custom_call.1} parent=5 // pred_check_branch
        %181 = sbr.rel (%p178) target = $region12
      $region11: #{tpu_custom_call.1} parent=5 // pred_region
        %s182 = ssub.s32 %s16, 1
        // Predicated region
        $region13: #{tpu_custom_call.1} parent=11 // pred_check
          %p183 = pneg %p49
        $region14: #{tpu_custom_call.1} parent=11 // pred_check_branch
          %185 = sbr.rel (%p183) target = $region16
        $region15: #{tpu_custom_call.1} parent=11 // pred_region
          %s187 = ssub.s32 16, 16
          %188 = vsyncadd [#allocation7], %s187
          %s190 = sshll.u32 %s0, 4
          %s191 = int_to_ptr.vmem [resolvable:$true] %s190
          %193 = dma.vmem_to_smem %s191, 16, [#allocation4], [#allocation7]
        $region16: #{tpu_custom_call.1} parent=11 // pred_fallthru
          _
        // Predicated region
        $region17: #{tpu_custom_call.1} parent=11 // pred_check
          %p194 = pneg %p126
        $region18: #{tpu_custom_call.1} parent=11 // pred_check_branch
          %196 = sbr.rel (%p194) target = $region20
        $region19: #{tpu_custom_call.1} parent=11 // pred_region
          _
        $region20: #{tpu_custom_call.1} parent=11 // pred_fallthru
          _
        // Predicated region
        $region21: #{tpu_custom_call.1} parent=11 // pred_check
          %p197 = pneg %p147
        $region22: #{tpu_custom_call.1} parent=11 // pred_check_branch
          %199 = sbr.rel (%p197) target = $region24
        $region23: #{tpu_custom_call.1} parent=11 // pred_region
          _
        $region24: #{tpu_custom_call.1} parent=11 // pred_fallthru
          _
      $region12: #{tpu_custom_call.1} parent=5 // pred_fallthru
        _
      %p200 = scmp.lt.s32.totalorder %s16, 2
      // Predicated region
      $region25: #{tpu_custom_call.1} parent=5 // pred_check
        %p201 = pneg %p200
      $region26: #{tpu_custom_call.1} parent=5 // pred_check_branch
        %203 = sbr.rel (%p201) target = $region28
      $region27: #{tpu_custom_call.1} parent=5 // pred_region
        // Predicated region
        $region29: #{tpu_custom_call.1} parent=27 // pred_check
          %p204 = pneg %p71
        $region30: #{tpu_custom_call.1} parent=27 // pred_check_branch
          %206 = sbr.rel (%p204) target = $region32
        $region31: #{tpu_custom_call.1} parent=27 // pred_region
          %s207 = sand.u32 %s61, 1
          %s208 = scalar_lea.sflag [#allocation5], %s207
          %s209 = sand.u32 %s61, 1
          %s210 = smul.addr %s209, 16
          %s211 = scalar_lea.vmem [#allocation8], %s210
          %s213 = ssub.s32 256, 256
          %214 = vsyncadd %s208, %s213
          %s215 = smul.addr %s23, 2
          %s216 = sadd.s32 %s24, %s215
          %s217 = smul.addr %s216, 128
          %s218 = scalar_lea.hbm %s1, %s217
          %s219 = sshll.u32 %s211, 4
          %s220 = int_to_ptr.vmem [resolvable:$true] %s219
          %225 = dma.hbm_to_vmem [thread:$0]  %s218, 256, %s220, %s208, 128, 128, 8
        $region32: #{tpu_custom_call.1} parent=27 // pred_fallthru
          _
        // Predicated region
        $region33: #{tpu_custom_call.1} parent=27 // pred_check
          %p226 = pneg %p99
        $region34: #{tpu_custom_call.1} parent=27 // pred_check_branch
          %228 = sbr.rel (%p226) target = $region36
        $region35: #{tpu_custom_call.1} parent=27 // pred_region
          %p229 = scmp.lt.s32.totalorder %s23, 1
          %s230 = scalar_select %p229, %s23, 1
          %p231 = scmp.lt.s32.totalorder %s24, 0
          %s232 = scalar_select %p231, %s24, 0
          %s233 = sadd.s32 %s232, %s230
          %s234 = scalar_lea.vmem %s2, %s233
        $region36: #{tpu_custom_call.1} parent=27 // pred_fallthru
          _
      $region28: #{tpu_custom_call.1} parent=5 // pred_fallthru
        _
      %p235 = scmp.le.s32.totalorder 1, %s16
      %p236 = scmp.lt.s32.totalorder %s16, 3
      %p237 = pnand %p235, %p236
      %p238 = pneg %p237
      // Predicated region
      $region37: #{tpu_custom_call.1} parent=5 // pred_check
        _
      $region38: #{tpu_custom_call.1} parent=5 // pred_check_branch
        %240 = sbr.rel (%p237) target = $region40
      $region39: #{tpu_custom_call.1} parent=5 // pred_region
        %s241 = ssub.s32 %s16, 1
        // Predicated region
        $region41: #{tpu_custom_call.1} parent=39 // pred_check
          %p242 = pneg %p49
        $region42: #{tpu_custom_call.1} parent=39 // pred_check_branch
          %244 = sbr.rel (%p242) target = $region44
        $region43: #{tpu_custom_call.1} parent=39 // pred_region
          %245 = dma.done [#allocation7], 16
        $region44: #{tpu_custom_call.1} parent=39 // pred_fallthru
          _
        %s246 = sand.u32 %s64, 1
        %s247 = scalar_lea.sflag [#allocation5], %s246
        %s248 = sand.u32 %s64, 1
        %s249 = smul.addr %s248, 16
        %s250 = scalar_lea.vmem [#allocation8], %s249
        // Predicated region
        $region45: #{tpu_custom_call.1} parent=39 // pred_check
          %p251 = pneg %p77
        $region46: #{tpu_custom_call.1} parent=39 // pred_check_branch
          %253 = sbr.rel (%p251) target = $region48
        $region47: #{tpu_custom_call.1} parent=39 // pred_region
          %254 = dma.done %s247, 256
        $region48: #{tpu_custom_call.1} parent=39 // pred_fallthru
          _
        %255 = sfence
        %p256 = pneg %p49
        %p257 = pneg %p46
        %s258 = sand.u32 %s64, 1
        %s259 = scalar_lea.sflag [#allocation5], %s258
        %s260 = sand.u32 %s64, 1
        %s261 = smul.addr %s260, 16
        %s262 = scalar_lea.vmem [#allocation8], %s261
        %p263 = pneg %p77
        %p264 = pneg %p74
        %p265 = scmp.lt.s32.totalorder %s25, 1
        %s266 = scalar_select %p265, %s25, 1
        %p267 = scmp.lt.s32.totalorder %s26, 0
        %s268 = scalar_select %p267, %s26, 0
        %s269 = sadd.s32 %s268, %s266
        %s270 = scalar_lea.vmem %s2, %s269
        %p271 = pneg %p105
        %p272 = pneg %p102
        %p273 = pneg %p126
        %p274 = pneg %p123
        %p275 = pneg %p147
        %p276 = pneg %p144
        %p277 = pneg %p168
        %p278 = pneg %p165
        %p279 = scmp.lt.s32.totalorder %s25, 1
        %s280 = scalar_select %p279, %s25, 1
        %p281 = scmp.lt.s32.totalorder %s26, 0
        %s282 = scalar_select %p281, %s26, 0
        %s283 = sadd.s32 %s282, %s280
        %s284 = scalar_lea.vmem %s2, %s283
        %p285 = scmp.eq.s32.totalorder %s25, 0
        %p286 = scmp.eq.s32.totalorder %s26, 0
        %p287 = pnand %p285, %p286
        %p288 = pneg %p287
        // Predicated region
        $region49: #{tpu_custom_call.1} parent=39 // pred_check
          _
        $region50: #{tpu_custom_call.1} parent=39 // pred_check_branch
          %290 = sbr.rel (%p287) target = $region52
        $region51: #{tpu_custom_call.1} parent=39 // pred_region
          %vm291 = vcmask 0
          %292 = vst.msk [vmem:[#allocation2] sm:$0x1] %vm291, 0.0
          %293 = vst.msk [vmem:[#allocation3] sm:$0x1] %vm291, 0.0
        $region52: #{tpu_custom_call.1} parent=39 // pred_fallthru
          _
        %v294 = vld [vmem:[%s284] sm:$0x1]
        %v295 = vld [vmem:[%s250] sm:$0xff]
        %v296 = vld [vmem:[%s250 + $0x8] sm:$0xff]
        %v297 = vlaneseq
        %v298 = vshrl.u32 %v297, 7
        %v299 = vadd.s32 %v298, 8
        %vm300 = vcmask 523264
        %v301 = vsel %vm300, %v295, -inf
        %v302 = vsel %vm300, %v296, -inf
        %v303 = vmax.f32 %v301, %v302
        %v304 = vrot.slane %v303, 4
        %v305 = vmax.f32 %v303, %v304
        %v306 = vrot.slane %v305, 2
        %v307 = vmax.f32 %v305, %v306
        %v308 = vrot.slane %v307, 1
        %v309 = vmax.f32 %v307, %v308
        %v310 = vsub.f32 %v295, %v309
        %v311 = vsub.f32 %v296, %v309
        %v312 = vmul.f32 %v310, 1.442695
        %v313 = vpow.pop %v312
        %v314 = vmul.f32 %v311, 1.442695
        %v315 = vpow.pop %v314
        %v316 = vsel %vm300, %v313, 0.0
        %v317 = vsel %vm300, %v315, 0.0
        %v318 = vadd.f32 %v316, %v317
        %v319 = vrot.slane %v318, 4
        %v320 = vadd.f32 %v318, %v319
        %v321 = vrot.slane %v320, 2
        %v322 = vadd.f32 %v320, %v321
        %v323 = vrot.slane %v322, 1
        %v324 = vadd.f32 %v322, %v323
        %v325 = vlog2.pop %v324
        %v326 = vmul.f32 %v325, 0.6931472
        %v327 = vlaneseq
        %v328 = vshrl.u32 %v327, 7
        %v329 = vsub.s32 0, %v328
        %v330 = vrot.slane %v294, %v329
        %vm331 = vcmp.eq.s32.totalorder %v298, %v330
        %vm332 = vcmp.eq.s32.totalorder %v299, %v330
        %v333 = vsel %vm331, %v310, 0.0
        %v334 = vsel %vm332, %v311, 0.0
        %v335 = vsel %vm300, %v333, 0.0
        %v336 = vsel %vm300, %v334, 0.0
        %v337 = vadd.f32 %v335, %v336
        %v338 = vrot.slane %v337, 4
        %v339 = vadd.f32 %v337, %v338
        %v340 = vrot.slane %v339, 2
        %v341 = vadd.f32 %v339, %v340
        %v342 = vrot.slane %v341, 1
        %v343 = vadd.f32 %v341, %v342
        %v344 = vsub.f32 %v326, %v343
        %vm345 = vcmp.eq.f32.partialorder %v295, %v309
        %vm346 = vcmp.eq.f32.partialorder %v296, %v309
        %v347 = vsel %vm345, %v298, 16
        %v348 = vsel %vm346, %v299, 16
        %v349 = vsel %vm300, %v347, 2147483647
        %v350 = vsel %vm300, %v348, 2147483647
        %vm351 = vcmp.lt.s32.totalorder %v349, %v350
        %v352 = vsel %vm351, %v349, %v350
        %v353 = vrot.slane %v352, 4
        %vm354 = vcmp.lt.s32.totalorder %v352, %v353
        %v355 = vsel %vm354, %v352, %v353
        %v356 = vrot.slane %v355, 2
        %vm357 = vcmp.lt.s32.totalorder %v355, %v356
        %v358 = vsel %vm357, %v355, %v356
        %v359 = vrot.slane %v358, 1
        %vm360 = vcmp.lt.s32.totalorder %v358, %v359
        %v361 = vsel %vm360, %v358, %v359
        %vm362 = vcmp.eq.s32.totalorder %v361, %v294
        %v363 = vsel %vm300, %v344, 0.0
        %364 = vadd.xlane.f32.xlu0 %v363
        %v365 = vpop.xlane.xlu0 %364
        %v366 = vsel %vm362, 1.0, 0.0
        %vm367 = vcmask 516096
        %v368 = vsel %vm367, %v366, 0.0
        %369 = vadd.xlane.f32.xlu0 %v368
        %v370 = vpop.xlane.xlu0 %369
        %v371 = vld [vmem:[#allocation2] sm:$0x1]
        %v372 = vadd.f32 %v371, %v365
        %vm373 = vcmask 0
        %374 = vst.msk [vmem:[#allocation2] sm:$0x1] %vm373, %v372
        %v375 = vld [vmem:[#allocation3] sm:$0x1]
        %v376 = vadd.f32 %v375, %v370
        %377 = vst.msk [vmem:[#allocation3] sm:$0x1] %vm373, %v376
        %p378 = scmp.eq.s32.totalorder %s25, 1
        %p379 = pnand %p378, %p286
        %p380 = pneg %p379
        // Predicated region
        $region53: #{tpu_custom_call.1} parent=39 // pred_check
          _
        $region54: #{tpu_custom_call.1} parent=39 // pred_check_branch
          %382 = sbr.rel (%p379) target = $region56
        $region55: #{tpu_custom_call.1} parent=39 // pred_region
          %v383 = vld [vmem:[%s3] sm:$0xff]
          %v384 = vld [vmem:[%s3 + $0x8] sm:$0xf]
          %v385 = vld [vmem:[%s4] sm:$0x1]
          %vm386 = vcmask 15360
          %v387 = vsel %vm386, %v383, -inf
          %vm388 = vcmask 11264
          %v389 = vsel %vm388, %v384, -inf
          %v390 = vmax.f32 %v387, %v389
          %v391 = vrot.slane %v390, 4
          %v392 = vmax.f32 %v390, %v391
          %v393 = vrot.slane %v392, 2
          %v394 = vmax.f32 %v392, %v393
          %v395 = vrot.slane %v394, 1
          %v396 = vmax.f32 %v394, %v395
          %v397 = vsub.f32 %v383, %v396
          %v398 = vsub.f32 %v384, %v396
          %v399 = vmul.f32 %v397, 1.442695
          %v400 = vpow.pop %v399
          %v401 = vmul.f32 %v398, 1.442695
          %v402 = vpow.pop %v401
          %v403 = vsel %vm386, %v400, 0.0
          %v404 = vsel %vm388, %v402, 0.0
          %v405 = vadd.f32 %v403, %v404
          %v406 = vrot.slane %v405, 4
          %v407 = vadd.f32 %v405, %v406
          %v408 = vrot.slane %v407, 2
          %v409 = vadd.f32 %v407, %v408
          %v410 = vrot.slane %v409, 1
          %v411 = vadd.f32 %v409, %v410
          %v412 = vlog2.pop %v411
          %v413 = vmul.f32 %v412, 0.6931472
          %v414 = vlaneseq
          %v415 = vshrl.u32 %v414, 7
          %v416 = vsub.s32 0, %v415
          %v417 = vrot.slane %v385, %v416
          %vm418 = vcmp.eq.s32.totalorder %v298, %v417
          %vm419 = vcmp.eq.s32.totalorder %v299, %v417
          %v420 = vsel %vm418, %v397, 0.0
          %v421 = vsel %vm419, %v398, 0.0
          %v422 = vsel %vm386, %v420, 0.0
          %v423 = vsel %vm388, %v421, 0.0
          %v424 = vadd.f32 %v422, %v423
          %v425 = vrot.slane %v424, 4
          %v426 = vadd.f32 %v424, %v425
          %v427 = vrot.slane %v426, 2
          %v428 = vadd.f32 %v426, %v427
          %v429 = vrot.slane %v428, 1
          %v430 = vadd.f32 %v428, %v429
          %v431 = vsub.f32 %v413, %v430
          %vm432 = vcmp.eq.f32.partialorder %v383, %v396
          %vm433 = vcmp.eq.f32.partialorder %v384, %v396
          %v434 = vsel %vm432, %v298, 12
          %v435 = vsel %vm433, %v299, 12
          %v436 = vsel %vm386, %v434, 2147483647
          %v437 = vsel %vm388, %v435, 2147483647
          %vm438 = vcmp.lt.s32.totalorder %v436, %v437
          %v439 = vsel %vm438, %v436, %v437
          %v440 = vrot.slane %v439, 4
          %vm441 = vcmp.lt.s32.totalorder %v439, %v440
          %v442 = vsel %vm441, %v439, %v440
          %v443 = vrot.slane %v442, 2
          %vm444 = vcmp.lt.s32.totalorder %v442, %v443
          %v445 = vsel %vm444, %v442, %v443
          %v446 = vrot.slane %v445, 1
          %vm447 = vcmp.lt.s32.totalorder %v445, %v446
          %v448 = vsel %vm447, %v445, %v446
          %vm449 = vcmp.eq.s32.totalorder %v448, %v385
          %v450 = vsel %vm386, %v431, 0.0
          %451 = vadd.xlane.f32.xlu0 %v450
          %v452 = vpop.xlane.xlu0 %451
          %v453 = vsel %vm449, 1.0, 0.0
          %vm454 = vcmask 8192
          %v455 = vsel %vm454, %v453, 0.0
          %456 = vadd.xlane.f32.xlu0 %v455
          %v457 = vpop.xlane.xlu0 %456
          %v458 = vld [vmem:[#allocation2] sm:$0x1]
          %v459 = vmul.f32 %v458, 0.0078125
          %v460 = vld [vmem:[#allocation3] sm:$0x1]
          %v461 = vmul.f32 %v460, 0.0078125
          %v462 = vmul.f32 %v452, 0.5
          %v463 = vmul.f32 %v457, 0.5
          %s464 = sld [smem:[#allocation4]]
          %s465 = sld [smem:[#allocation4 + $0x1]]
          %v466 = vstv %s464
          %v467 = vmul.f32 %v466, %v459
          %v468 = vstv %s465
          %v469 = vmul.f32 %v468, %v462
          %v470 = vadd.f32 %v467, %v469
          %v471 = vlaneseq
          %v472 = vand.u32 %v471, 127
          %vm473 = vcmp.eq.s32.totalorder %v472, 0
          %475 = vset.pattern.permute.xlu0 0
          %476 = vperm.xlu0 %475, %v470
          %v477 = vpop.permute.xlu0 %476
          %v479 = vlaneseq
          %v480 = vshrl.u32 %v479, 7
          %v481 = vsub.s32 0, %v480
          %v482 = vrot.slane %v477, %v481
          %v483 = vsel %vm473, %v482, 0.0
          %vm484 = vcmp.eq.s32.totalorder %v472, 1
          %486 = vset.pattern.permute.xlu0 0
          %487 = vperm.xlu0 %486, %v459
          %v488 = vpop.permute.xlu0 %487
          %v490 = vlaneseq
          %v491 = vshrl.u32 %v490, 7
          %v492 = vsub.s32 0, %v491
          %v493 = vrot.slane %v488, %v492
          %v494 = vsel %vm484, %v493, 0.0
          %v495 = vadd.f32 %v483, %v494
          %vm496 = vcmp.eq.s32.totalorder %v472, 2
          %v497 = vsel %vm496, %v462, 0.0
          %v498 = vadd.f32 %v495, %v497
          %vm499 = vcmp.eq.s32.totalorder %v472, 3
          %501 = vset.pattern.permute.xlu0 0
          %502 = vperm.xlu0 %501, %v461
          %v503 = vpop.permute.xlu0 %502
          %v505 = vlaneseq
          %v506 = vshrl.u32 %v505, 7
          %v507 = vsub.s32 0, %v506
          %v508 = vrot.slane %v503, %v507
          %v509 = vsel %vm499, %v508, 0.0
          %v510 = vadd.f32 %v498, %v509
          %vm511 = vcmp.eq.s32.totalorder %v472, 4
          %v512 = vsel %vm511, %v463, 0.0
          %v513 = vadd.f32 %v510, %v512
          %514 = vst [vmem:[#allocation9] sm:$0x1] %v513
        $region56: #{tpu_custom_call.1} parent=39 // pred_fallthru
          _
        // Predicated region
        $region57: #{tpu_custom_call.1} parent=39 // pred_check
          %p515 = pneg %p165
        $region58: #{tpu_custom_call.1} parent=39 // pred_check_branch
          %517 = sbr.rel (%p515) target = $region60
        $region59: #{tpu_custom_call.1} parent=39 // pred_region
          %s519 = ssub.s32 16, 16
          %520 = vsyncadd [#allocation6], %s519
          %s522 = sshll.u32 [#allocation9], 4
          %s523 = int_to_ptr.vmem [resolvable:$true] %s522
          %525 = dma.vmem_to_hbm [thread:$0]  %s523, 16, %s5, [#allocation6]
        $region60: #{tpu_custom_call.1} parent=39 // pred_fallthru
          _
        // Predicated region
        $region61: #{tpu_custom_call.1} parent=39 // pred_check
          %p526 = pneg %p165
        $region62: #{tpu_custom_call.1} parent=39 // pred_check_branch
          %528 = sbr.rel (%p526) target = $region64
        $region63: #{tpu_custom_call.1} parent=39 // pred_region
          %529 = dma.done [#allocation6], 16
        $region64: #{tpu_custom_call.1} parent=39 // pred_fallthru
          _
      $region40: #{tpu_custom_call.1} parent=5 // pred_fallthru
        _
      %p530 = scmp.le.s32.totalorder 2, %s16
      // Predicated region
      $region65: #{tpu_custom_call.1} parent=5 // pred_check
        %p531 = pneg %p530
      $region66: #{tpu_custom_call.1} parent=5 // pred_check_branch
        %533 = sbr.rel (%p531) target = $region68
      $region67: #{tpu_custom_call.1} parent=5 // pred_region
        %s534 = ssub.s32 %s16, 2
      $region68: #{tpu_custom_call.1} parent=5 // pred_fallthru
        _
    $region6: #{tpu_custom_call.1} parent=1 // loop_footer
      %s20 = sadd.s32 1, %s16
    $region7: #{tpu_custom_call.1} parent=1 // loop_footer_branch
      %15 = sbr.rel target = $region3
    $region8: #{tpu_custom_call.1} parent=1 // loop_exit
      _
    %535 = vsyncpa [#allocation5], 1
    %s536 = scalar_lea.sflag [#allocation5], 1
    %537 = vsyncpa %s536, 1
    %538 = vsyncpa [#allocation6], 1
    %s539 = scalar_lea.sflag [#allocation6], 1
    %540 = vsyncpa %s539, 1
    %541 = vsyncpa [#allocation7], 1
    %s542 = scalar_lea.sflag [#allocation7], 1
    %543 = vsyncpa %s542, 1

</llo_original>
